<compile_context>
chip_gen: v5e
topology: v5e:2x2
jax: 0.10.0
libtpu: 0.0.40
codegen_flags: <defaults>
</compile_context>

<pallas_src>
import jax
import jax.numpy as jnp
from jax.experimental import pallas as pl
from jax.experimental.pallas import tpu as pltpu


def _round_up(x, m):
    return ((x + m - 1) // m) * m


def _round_down(x, m):
    return (x // m) * m


def _vmem_budget_bytes():
    """Per-core VMEM budget with compiler headroom (generation-aware)."""
    try:
        cap = int(pltpu.get_tpu_info().vmem_capacity_bytes)
    except Exception:
        cap = 64 * 1024 * 1024
    # ~1/6 headroom: v7x (64 MiB/TC) -> ~53 MiB; v5e/v6e (128 MiB) -> ~107 MiB.
    return max(16 * 1024 * 1024, (cap * 5) // 6)


# ---------------------------------------------------------------------------
# Kernels
# ---------------------------------------------------------------------------

def _critic_kernel_resident(x_ref, w1_ref, b1_ref, w2_ref, b2_ref, o_ref):
    # x_ref  : (TB, D)  VMEM (f32 or bf16)
    # w1_ref : (D, D)   VMEM (bf16 or f32), resident / single-buffered
    # b1_ref : (1, D)   VMEM f32, resident
    # w2_ref : (1, D)   VMEM f32, resident (2nd Linear's weight as a row)
    # b2_ref : (1,)     SMEM f32 scalar
    # o_ref  : (1, TB)  VMEM f32 (lane-dense output row for this batch tile)
    x = x_ref[...].astype(w1_ref.dtype)
    h = jnp.dot(x, w1_ref[...], preferred_element_type=jnp.float32) + b1_ref[...]
    h = jnp.maximum(h, 0.0)           # ReLU; Dropout = identity at eval time
    v = jnp.sum(h * w2_ref[...], axis=-1) + b2_ref[0]   # VPU GEMV (N=1)
    o_ref[...] = v[None, :].astype(o_ref.dtype)


def _critic_kernel_ktiled(x_ref, w1_ref, b1_ref, w2_ref, b2_ref, o_ref, acc_ref):
    # K-streamed first Linear: w1 arrives in (TK, D) blocks, acc is f32 scratch.
    # x_ref  : (TB, TK)   w1_ref : (TK, D)   acc_ref : (TB, D) f32
    k = pl.program_id(1)

    @pl.when(k == 0)
    def _():
        acc_ref[...] = jnp.zeros_like(acc_ref)

    x = x_ref[...].astype(w1_ref.dtype)
    acc_ref[...] += jnp.dot(x, w1_ref[...], preferred_element_type=jnp.float32)

    @pl.when(k == pl.num_programs(1) - 1)
    def _():
        h = jnp.maximum(acc_ref[...] + b1_ref[...], 0.0)
        v = jnp.sum(h * w2_ref[...], axis=-1) + b2_ref[0]
        o_ref[...] = v[None, :].astype(o_ref.dtype)


# ---------------------------------------------------------------------------
# Wrapper
# ---------------------------------------------------------------------------

def prepare_critic_params(w1, b1, w2, b2, matmul_dtype=jnp.bfloat16):
    """Cast / reshape parameters ONCE (outside the per-call hot path)."""
    D = w1.shape[0]
    return {
        "w1": jnp.asarray(w1, matmul_dtype),                      # (D, D)
        "b1": jnp.asarray(b1, jnp.float32).reshape(1, D),         # (1, D)
        "w2": jnp.asarray(w2, jnp.float32).reshape(1, D),         # (1, D) row
        "b2": jnp.asarray(b2, jnp.float32).reshape(1),            # (1,) scalar
    }


def critic_forward(state, params, *, tile_b=None, force_k_tiling=False,
                   k_tile=None):
    """state: (B, D) f32 or bf16. Returns (B,) f32 (0-d when B == 1,
    matching PyTorch .squeeze())."""
    B, D = state.shape
    w1, b1, w2, b2 = params["w1"], params["b1"], params["w2"], params["b2"]
    assert w1.shape == (D, D)

    x_it = state.dtype.itemsize
    w_it = w1.dtype.itemsize
    budget = _vmem_budget_bytes()

    # --- choose resident-w1 vs K-tiled path -------------------------------
    resident_bytes = D * D * w_it + 2 * D * 4            # w1 + b1/w2 rows
    # per batch-row bytes: x double-buffer + in-kernel x cast + f32 h + out
    per_row_res = 2 * D * x_it + D * w_it + D * 4 + 8
    use_k = force_k_tiling or (resident_bytes + 128 * per_row_res > budget)
    if use_k and (D % 128 != 0) and not force_k_tiling:
        use_k = False   # TODO(synk): pad K for non-128-multiple rnn_dim

    if not use_k:
        # ------------------ resident-w1 tiling -----------------------------
        if tile_b is None:
            avail = max(budget - resident_bytes, per_row_res * 128)
            tb_cap = max(128, min(8192, _round_down(avail // per_row_res, 128)))
        else:
            tb_cap = max(128, _round_down(tile_b, 128)) if B > tile_b else tile_b
        if B <= tb_cap:
            # Split a single big tile in two so the "parallel" axis can shard
            # across both TensorCores (v7x) when the x stream dominates the
            # duplicated per-core w1 read.
            if B >= 512 and B * D * x_it > 2 * D * D * w_it:
                tb = _round_up(pl.cdiv(B, 2), 128)
                n_tiles = pl.cdiv(B, tb)
            else:
                tb = _round_up(B, 8)
                n_tiles = 1
        else:
            tb = tb_cap
            n_tiles = pl.cdiv(B, tb)
        n_k = 1
        tk = D
    else:
        # ------------------ K-tiled w1 tiling ------------------------------
        if k_tile is not None:
            tk = k_tile
        else:
            tk = 128
            for cand in (1024, 512, 256, 128):
                if D % cand == 0:
                    tk = cand
                    break
        assert D % tk == 0 and tk % 128 == 0
        n_k = D // tk
        resident_k = 2 * D * 4
        w1_stream = 2 * tk * D * w_it                     # double-buffered w1 blk
        # x dbuf + x cast + f32 acc + f32 dot temp + out
        per_row_k = 2 * tk * x_it + tk * w_it + 2 * D * 4 + 8
        if tile_b is None:
            avail = max(budget - resident_k - w1_stream, per_row_k * 128)
            tb_cap = max(128, min(4096, _round_down(avail // per_row_k, 128)))
        else:
            tb_cap = max(128, _round_down(tile_b, 128)) if B > tile_b else tile_b
        if B <= tb_cap:
            tb = _round_up(B, 8)
            n_tiles = 1
        else:
            tb = tb_cap
            n_tiles = pl.cdiv(B, tb)

    b_pad = tb * n_tiles
    x = state if b_pad == B else jnp.pad(state, ((0, b_pad - B), (0, 0)))

    def _build_and_run(single_buffer_weights):
        def resident_spec(shape, index_map):
            if single_buffer_weights:
                return pl.BlockSpec(shape, index_map,
                                    pipeline_mode=pl.Buffered(1))
            return pl.BlockSpec(shape, index_map)

        if not use_k:
            kernel = _critic_kernel_resident
            grid = (n_tiles,)
            dims = ("parallel",)
            in_specs = [
                pl.BlockSpec((tb, D), lambda i: (i, 0)),          # x: batch-tiled
                resident_spec((D, D), lambda i: (0, 0)),          # w1: resident
                resident_spec((1, D), lambda i: (0, 0)),          # b1: resident
                resident_spec((1, D), lambda i: (0, 0)),          # w2: resident
                pl.BlockSpec(memory_space=pltpu.MemorySpace.SMEM),  # b2 scalar
            ]
            out_specs = pl.BlockSpec((1, tb), lambda i: (0, i))
            scratch = []
        else:
            kernel = _critic_kernel_ktiled
            grid = (n_tiles, n_k)
            dims = ("parallel", "arbitrary")
            in_specs = [
                pl.BlockSpec((tb, tk), lambda i, k: (i, k)),      # x: (B, K) tiles
                pl.BlockSpec((tk, D), lambda i, k: (k, 0)),       # w1: K-streamed
                resident_spec((1, D), lambda i, k: (0, 0)),       # b1: resident
                resident_spec((1, D), lambda i, k: (0, 0)),       # w2: resident
                pl.BlockSpec(memory_space=pltpu.MemorySpace.SMEM),
            ]
            out_specs = pl.BlockSpec((1, tb), lambda i, k: (0, i))
            scratch = [pltpu.VMEM((tb, D), jnp.float32)]

        return pl.pallas_call(
            kernel,
            out_shape=jax.ShapeDtypeStruct((1, b_pad), jnp.float32),
            grid_spec=pltpu.PrefetchScalarGridSpec(
                num_scalar_prefetch=0,
                grid=grid,
                in_specs=in_specs,
                out_specs=out_specs,
                scratch_shapes=scratch,
            ),
            compiler_params=pltpu.CompilerParams(
                dimension_semantics=dims,
                vmem_limit_bytes=int(budget),
            ),
        )(x, w1, b1, w2, b2)

    try:
        out = _build_and_run(True)
    except Exception:
        # Installed JAX rejected pipeline_mode=Buffered(1); default buffering.
        out = _build_and_run(False)

    vals = out[0, :B]
    return jnp.squeeze(vals)   # (B,) ; 0-d scalar when B == 1 (torch .squeeze())


# ---------------------------------------------------------------------------
# Reference & params
# ---------------------------------------------------------------------------

def reference_forward(state, w1, b1, w2, b2, matmul_dtype=jnp.float32):
    """Plain-JAX reference (dropout = identity at eval)."""
    h = (jnp.dot(state.astype(matmul_dtype), w1.astype(matmul_dtype),
                 preferred_element_type=jnp.float32)
         + b1.reshape(1, -1))
    h = jnp.maximum(h, 0.0)
    v = jnp.sum(h * w2.reshape(1, -1), axis=-1) + b2.reshape(())
    return jnp.squeeze(v)


def init_params(key, rnn_dim):
    """Deterministic synthetic parameters matching the module's shapes."""
    k1, k2, k3, k4 = jax.random.split(key, 4)
    scale = 1.0 / jnp.sqrt(rnn_dim)
    # Stored as (in, out): kernels compute x @ W + b.
    w1 = jax.random.uniform(k1, (rnn_dim, rnn_dim), jnp.float32, -scale, scale)
    b1 = jax.random.uniform(k2, (rnn_dim,), jnp.float32, -scale, scale)
    w2 = jax.random.uniform(k3, (rnn_dim, 1), jnp.float32, -scale, scale)
    b2 = jax.random.uniform(k4, (1,), jnp.float32, -scale, scale)
    return w1, b1, w2, b2


if __name__ == "__main__":
    key = jax.random.PRNGKey(0)
    k_x, k_p = jax.random.split(key)

    # --- Case 1: default bf16-weight path, tiny ragged batch ---------------
    rnn_dim, batch = 128, 13          # batch not a multiple of 8: padding path
    state = jax.random.normal(k_x, (batch, rnn_dim), jnp.float32)
    w1, b1, w2, b2 = init_params(k_p, rnn_dim)

    params_bf16 = prepare_critic_params(w1, b1, w2, b2, jnp.bfloat16)  # cast once
    value = jax.block_until_ready(critic_forward(state, params_bf16))
    assert value.shape == (batch,)
    ref_bf16 = reference_forward(state, w1, b1, w2, b2, jnp.bfloat16)
    assert jnp.allclose(value, ref_bf16, atol=2e-3, rtol=2e-3)
    ref_f32 = reference_forward(state, w1, b1, w2, b2, jnp.float32)
    assert jnp.allclose(value, ref_f32, atol=5e-2, rtol=5e-2)

    # --- Case 2: pure-f32 path matches module semantics tightly ------------
    params_f32 = prepare_critic_params(w1, b1, w2, b2, jnp.float32)
    value_f32 = jax.block_until_ready(critic_forward(state, params_f32))
    assert jnp.allclose(value_f32, ref_f32, atol=1e-5, rtol=1e-5)

    # --- Case 3: multi-tile batch path (small tile override) ---------------
    state3 = jax.random.normal(jax.random.PRNGKey(1), (300, rnn_dim), jnp.float32)
    v3 = jax.block_until_ready(critic_forward(state3, params_f32, tile_b=128))
    r3 = reference_forward(state3, w1, b1, w2, b2, jnp.float32)
    assert v3.shape == (300,)
    assert jnp.allclose(v3, r3, atol=1e-4, rtol=1e-4)

    # --- Case 4: K-tiled w1 path (forced, small D for the test) ------------
    rnn_dim4, batch4 = 256, 40
    k4x, k4p = jax.random.split(jax.random.PRNGKey(2))
    state4 = jax.random.normal(k4x, (batch4, rnn_dim4), jnp.float32)
    w14, b14, w24, b24 = init_params(k4p, rnn_dim4)
    params4 = prepare_critic_params(w14, b14, w24, b24, jnp.float32)
    v4 = jax.block_until_ready(
        critic_forward(state4, params4, force_k_tiling=True, k_tile=128))
    r4 = reference_forward(state4, w14, b14, w24, b24, jnp.float32)
    assert v4.shape == (batch4,)
    assert jnp.allclose(v4, r4, atol=1e-4, rtol=1e-4)

    print("KERNEL_OK")
</pallas_src>

<mosaic_0001>
module attributes {stable_mosaic.version = 11 : i64} {
  func.func @_critic_kernel_resident(%arg0: i32, %arg1: memref<16x128xf32, #tpu.memory_space<vmem>>, %arg2: memref<128x128xbf16, #tpu.memory_space<vmem>>, %arg3: memref<1x128xf32, #tpu.memory_space<vmem>>, %arg4: memref<1x128xf32, #tpu.memory_space<vmem>>, %arg5: memref<1xf32, #tpu.memory_space<smem>>, %arg6: memref<1x16xf32, #tpu.memory_space<vmem>>) attributes {dimension_semantics = [#tpu.dimension_semantics<parallel>], iteration_bounds = array<i64: 1>, scalar_prefetch = 0 : i64, scratch_operands = 0 : i64, tpu.core_type = #tpu.core_type<tc>, window_params = [{transform_indices = @transform_0, window_bounds = array<i64: 16, 128>}, {pipeline_mode = #tpu.pipeline_mode<synchronous>, transform_indices = @transform_1, window_bounds = array<i64: 128, 128>}, {pipeline_mode = #tpu.pipeline_mode<synchronous>, transform_indices = @transform_2, window_bounds = array<i64: 1, 128>}, {pipeline_mode = #tpu.pipeline_mode<synchronous>, transform_indices = @transform_3, window_bounds = array<i64: 1, 128>}, {transform_indices = @transform_4, window_bounds = array<i64: 1>}, {transform_indices = @transform_5, window_bounds = array<i64: 1, 16>}]} {
    %c0 = arith.constant 0 : index
    %c0_0 = arith.constant 0 : index
    %0 = vector.load %arg1[%c0, %c0_0] : memref<16x128xf32, #tpu.memory_space<vmem>>, vector<16x128xf32>
    %1 = arith.truncf %0 : vector<16x128xf32> to vector<16x128xbf16>
    %c0_1 = arith.constant 0 : index
    %c0_2 = arith.constant 0 : index
    %2 = vector.load %arg2[%c0_1, %c0_2] : memref<128x128xbf16, #tpu.memory_space<vmem>>, vector<128x128xbf16>
    %cst = arith.constant dense<0.000000e+00> : vector<16x128xf32>
    %3 = tpu.matmul %1, %2, %cst {dimension_numbers = #tpu.dot_dimension_numbers<[1], [0], [0], [1], [0, 0, 1, 1], [], []>} : vector<16x128xbf16>, vector<128x128xbf16>, vector<16x128xf32> -> vector<16x128xf32>
    %c0_3 = arith.constant 0 : index
    %c0_4 = arith.constant 0 : index
    %4 = vector.load %arg3[%c0_3, %c0_4] : memref<1x128xf32, #tpu.memory_space<vmem>>, vector<1x128xf32>
    %5 = vector.broadcast %4 : vector<1x128xf32> to vector<16x128xf32>
    %6 = arith.addf %3, %5 : vector<16x128xf32>
    %cst_5 = arith.constant 0.000000e+00 : f32
    %7 = vector.broadcast %cst_5 : f32 to vector<16x128xf32>
    %8 = arith.maximumf %6, %7 : vector<16x128xf32>
    %c0_6 = arith.constant 0 : index
    %c0_7 = arith.constant 0 : index
    %9 = vector.load %arg4[%c0_6, %c0_7] : memref<1x128xf32, #tpu.memory_space<vmem>>, vector<1x128xf32>
    %10 = vector.broadcast %9 : vector<1x128xf32> to vector<16x128xf32>
    %11 = arith.mulf %8, %10 : vector<16x128xf32>
    %cst_8 = arith.constant dense<0.000000e+00> : vector<16xf32>
    %12 = vector.multi_reduction <add>, %11, %cst_8 [1] : vector<16x128xf32> to vector<16xf32>
    %c0_9 = arith.constant 0 : index
    %13 = memref.load %arg5[%c0_9] : memref<1xf32, #tpu.memory_space<smem>>
    %14 = vector.broadcast %13 : f32 to vector<16xf32>
    %15 = arith.addf %12, %14 : vector<16xf32>
    %16 = vector.shape_cast %15 : vector<16xf32> to vector<1x16xf32>
    %c0_10 = arith.constant 0 : index
    %c0_11 = arith.constant 0 : index
    %17 = vector.load %arg6[%c0_10, %c0_11] : memref<1x16xf32, #tpu.memory_space<vmem>>, vector<1x16xf32>
    tpu.vector_store %arg6[%c0_10, %c0_11], %16 {strides = array<i32>} : memref<1x16xf32, #tpu.memory_space<vmem>>, vector<1x16xf32>,
    return
  }
  func.func @transform_0(%arg0: i32) -> (i32, i32) {
    %c0_i32 = arith.constant 0 : i32
    %c0_i32_0 = arith.constant 0 : i32
    return %arg0, %c0_i32 : i32, i32
  }
  func.func @transform_1(%arg0: i32) -> (i32, i32) {
    %c0_i32 = arith.constant 0 : i32
    %c0_i32_0 = arith.constant 0 : i32
    %c0_i32_1 = arith.constant 0 : i32
    return %c0_i32, %c0_i32_0 : i32, i32
  }
  func.func @transform_2(%arg0: i32) -> (i32, i32) {
    %c0_i32 = arith.constant 0 : i32
    %c0_i32_0 = arith.constant 0 : i32
    %c0_i32_1 = arith.constant 0 : i32
    return %c0_i32, %c0_i32_0 : i32, i32
  }
  func.func @transform_3(%arg0: i32) -> (i32, i32) {
    %c0_i32 = arith.constant 0 : i32
    %c0_i32_0 = arith.constant 0 : i32
    %c0_i32_1 = arith.constant 0 : i32
    return %c0_i32, %c0_i32_0 : i32, i32
  }
  func.func @transform_4(%arg0: i32) -> i32 {
    %c0_i32 = arith.constant 0 : i32
    %c0_i32_0 = arith.constant 0 : i32
    return %c0_i32 : i32
  }
  func.func @transform_5(%arg0: i32) -> (i32, i32) {
    %c0_i32 = arith.constant 0 : i32
    %c0_i32_0 = arith.constant 0 : i32
    return %c0_i32, %arg0 : i32, i32
  }
}

module attributes {stable_mosaic.version = 11 : i64} {
  func.func @_critic_kernel_resident(%arg0: i32, %arg1: memref<16x128xf32, #tpu.memory_space<vmem>>, %arg2: memref<128x128xbf16, #tpu.memory_space<vmem>>, %arg3: memref<1x128xf32, #tpu.memory_space<vmem>>, %arg4: memref<1x128xf32, #tpu.memory_space<vmem>>, %arg5: memref<1xf32, #tpu.memory_space<smem>>, %arg6: memref<1x16xf32, #tpu.memory_space<vmem>>) attributes {dimension_semantics = [#tpu.dimension_semantics<parallel>], iteration_bounds = array<i64: 1>, scalar_prefetch = 0 : i64, scratch_operands = 0 : i64, tpu.core_type = #tpu.core_type<tc>, window_params = [{transform_indices = @transform_0, window_bounds = array<i64: 16, 128>}, {pipeline_mode = #tpu.pipeline_mode<synchronous>, transform_indices = @transform_1, window_bounds = array<i64: 128, 128>}, {pipeline_mode = #tpu.pipeline_mode<synchronous>, transform_indices = @transform_2, window_bounds = array<i64: 1, 128>}, {pipeline_mode = #tpu.pipeline_mode<synchronous>, transform_indices = @transform_3, window_bounds = array<i64: 1, 128>}, {transform_indices = @transform_4, window_bounds = array<i64: 1>}, {transform_indices = @transform_5, window_bounds = array<i64: 1, 16>}]} {
    %c0 = arith.constant 0 : index
    %c0_0 = arith.constant 0 : index
    %0 = vector.load %arg1[%c0, %c0_0] : memref<16x128xf32, #tpu.memory_space<vmem>>, vector<16x128xf32>
    %1 = arith.truncf %0 : vector<16x128xf32> to vector<16x128xbf16>
    %c0_1 = arith.constant 0 : index
    %c0_2 = arith.constant 0 : index
    %2 = vector.load %arg2[%c0_1, %c0_2] : memref<128x128xbf16, #tpu.memory_space<vmem>>, vector<128x128xbf16>
    %cst = arith.constant dense<0.000000e+00> : vector<16x128xf32>
    %3 = tpu.matmul %1, %2, %cst {dimension_numbers = #tpu.dot_dimension_numbers<[1], [0], [0], [1], [0, 0, 1, 1], [], []>} : vector<16x128xbf16>, vector<128x128xbf16>, vector<16x128xf32> -> vector<16x128xf32>
    %c0_3 = arith.constant 0 : index
    %c0_4 = arith.constant 0 : index
    %4 = vector.load %arg3[%c0_3, %c0_4] : memref<1x128xf32, #tpu.memory_space<vmem>>, vector<1x128xf32>
    %5 = vector.broadcast %4 : vector<1x128xf32> to vector<16x128xf32>
    %6 = arith.addf %3, %5 : vector<16x128xf32>
    %cst_5 = arith.constant 0.000000e+00 : f32
    %7 = vector.broadcast %cst_5 : f32 to vector<16x128xf32>
    %8 = arith.maximumf %6, %7 : vector<16x128xf32>
    %c0_6 = arith.constant 0 : index
    %c0_7 = arith.constant 0 : index
    %9 = vector.load %arg4[%c0_6, %c0_7] : memref<1x128xf32, #tpu.memory_space<vmem>>, vector<1x128xf32>
    %10 = vector.broadcast %9 : vector<1x128xf32> to vector<16x128xf32>
    %11 = arith.mulf %8, %10 : vector<16x128xf32>
    %cst_8 = arith.constant dense<0.000000e+00> : vector<16xf32>
    %12 = vector.multi_reduction <add>, %11, %cst_8 [1] : vector<16x128xf32> to vector<16xf32>
    %c0_9 = arith.constant 0 : index
    %13 = memref.load %arg5[%c0_9] : memref<1xf32, #tpu.memory_space<smem>>
    %14 = vector.broadcast %13 : f32 to vector<16xf32>
    %15 = arith.addf %12, %14 : vector<16xf32>
    %16 = vector.shape_cast %15 : vector<16xf32> to vector<1x16xf32>
    %c0_10 = arith.constant 0 : index
    %c0_11 = arith.constant 0 : index
    %17 = vector.load %arg6[%c0_10, %c0_11] : memref<1x16xf32, #tpu.memory_space<vmem>>, vector<1x16xf32>
    tpu.vector_store %arg6[%c0_10, %c0_11], %16 {strides = array<i32>} : memref<1x16xf32, #tpu.memory_space<vmem>>, vector<1x16xf32>,
    return
  }
  func.func @transform_0(%arg0: i32) -> (i32, i32) {
    %c0_i32 = arith.constant 0 : i32
    %c0_i32_0 = arith.constant 0 : i32
    return %arg0, %c0_i32 : i32, i32
  }
  func.func @transform_1(%arg0: i32) -> (i32, i32) {
    %c0_i32 = arith.constant 0 : i32
    %c0_i32_0 = arith.constant 0 : i32
    %c0_i32_1 = arith.constant 0 : i32
    return %c0_i32, %c0_i32_0 : i32, i32
  }
  func.func @transform_2(%arg0: i32) -> (i32, i32) {
    %c0_i32 = arith.constant 0 : i32
    %c0_i32_0 = arith.constant 0 : i32
    %c0_i32_1 = arith.constant 0 : i32
    return %c0_i32, %c0_i32_0 : i32, i32
  }
  func.func @transform_3(%arg0: i32) -> (i32, i32) {
    %c0_i32 = arith.constant 0 : i32
    %c0_i32_0 = arith.constant 0 : i32
    %c0_i32_1 = arith.constant 0 : i32
    return %c0_i32, %c0_i32_0 : i32, i32
  }
  func.func @transform_4(%arg0: i32) -> i32 {
    %c0_i32 = arith.constant 0 : i32
    %c0_i32_0 = arith.constant 0 : i32
    return %c0_i32 : i32
  }
  func.func @transform_5(%arg0: i32) -> (i32, i32) {
    %c0_i32 = arith.constant 0 : i32
    %c0_i32_0 = arith.constant 0 : i32
    return %c0_i32, %arg0 : i32, i32
  }
}

</mosaic_0001>

<llo_original>
// kernel: tpu_custom_call.1
$region0: #{tpu_custom_call.1}
  #allocation0 [shape = 'u32[]', space=smem, size = 0x4, offset = 0x4, fixed_abs, tag = 'smem constant byte address 0x4 - core index']
  #allocation1 [shape = 'u32[72,128]{1,0:T(1,128)}', space=vmem, size = 0x9000, scoped, tag = 'internal scratch']
  #allocation2 [shape = 'f32[1]{0:T(128)S(6)}', space=smem, size = 0x200, scoped, tag = 'scoped memory for tpu_custom_call.1']
  %s0 = inlined_call_operand.hbm [shape: f32[16,128], index: 0, kind: input, shape index: {}]
  %s1 = inlined_call_operand.hbm [shape: bf16[128,128], index: 1, kind: input, shape index: {}]
  %s2 = inlined_call_operand.vmem [shape: f32[1,128], index: 2, kind: input, shape index: {}]
  %s3 = inlined_call_operand.vmem [shape: f32[1,128], index: 3, kind: input, shape index: {}]
  %s4 = inlined_call_operand.<no memory space> [shape: f32[1], index: 4, kind: input, shape index: {}]
  %s5 = inlined_call_operand.hbm [shape: f32[1,16], index: 5, kind: output, shape index: {}]
  %s6 = sld [smem:[#allocation0]]
  $region38: #{tpu_custom_call.1} parent=0
    _
  %s8 = ssub.s32 1, %s6
  %s9 = scalar_select 0, %s8, %s6
  %10 = sst [smem:[#allocation2]] %s4
  $region1: #{tpu_custom_call.1} parent=0
    #allocation3 [shape = 'u8[8192]{0}', space=vmem, size = 0x2000, scoped, tag = 'input window, operand 0, single buffered']
    #allocation4 [shape = 's32[1]{0}', space=sflag, size = 0x4, scoped, tag = 'scoped memory for tpu_custom_call.1']
    #allocation5 [shape = 's32[1]{0}', space=sflag, size = 0x4, scoped, tag = 'scoped memory for tpu_custom_call.1']
    #allocation6 [shape = 'u8[32768]{0}', space=vmem, size = 0x8000, scoped, tag = 'input window, operand 1, single buffered']
    #allocation7 [shape = 's32[1]{0}', space=sflag, size = 0x4, scoped, tag = 'scoped memory for tpu_custom_call.1']
    #allocation8 [shape = 'u8[512]{0}', space=vmem, size = 0x400, scoped, tag = 'output window, operand 0, single buffered']
    %11 = vsyncpa [#allocation4], 0
    %12 = vsyncpa [#allocation7], 0
    %13 = vsyncpa [#allocation5], 0
    // Predicated region
    $region2: #{tpu_custom_call.1} parent=1 // pred_check
      _
    $region3: #{tpu_custom_call.1} parent=1 // pred_check_branch
      %15 = sbr.rel (0) target = $region5
    $region4: #{tpu_custom_call.1} parent=1 // pred_region
      %17 = vsyncadd [#allocation4], 0
      %s18 = sshll.u32 %s0, 4
      %s19 = int_to_ptr.hbm [resolvable:$true] %s18
      %s20 = sshll.u32 [#allocation3], 4
      %s21 = int_to_ptr.vmem [resolvable:$true] %s20
      %26 = dma.hbm_to_vmem [thread:$0]  %s19, 256, %s21, [#allocation4], 128, 128, 8
    $region5: #{tpu_custom_call.1} parent=1 // pred_fallthru
      _
    // Predicated region
    $region6: #{tpu_custom_call.1} parent=1 // pred_check
      _
    $region7: #{tpu_custom_call.1} parent=1 // pred_check_branch
      %28 = sbr.rel (0) target = $region9
    $region8: #{tpu_custom_call.1} parent=1 // pred_region
      %30 = vsyncadd [#allocation7], 0
      %s31 = sshll.u32 %s1, 4
      %s32 = int_to_ptr.hbm [resolvable:$true] %s31
      %s33 = sshll.u32 [#allocation6], 4
      %s34 = int_to_ptr.vmem [resolvable:$true] %s33
      %39 = dma.hbm_to_vmem [thread:$0]  %s32, 1024, %s34, [#allocation7], 64, 64, 4
    $region9: #{tpu_custom_call.1} parent=1 // pred_fallthru
      _
    // Predicated region
    $region10: #{tpu_custom_call.1} parent=1 // pred_check
      _
    $region11: #{tpu_custom_call.1} parent=1 // pred_check_branch
      %41 = sbr.rel (0) target = $region13
    $region12: #{tpu_custom_call.1} parent=1 // pred_region
      _
    $region13: #{tpu_custom_call.1} parent=1 // pred_fallthru
      _
    // Predicated region
    $region14: #{tpu_custom_call.1} parent=1 // pred_check
      _
    $region15: #{tpu_custom_call.1} parent=1 // pred_check_branch
      %43 = sbr.rel (0) target = $region17
    $region16: #{tpu_custom_call.1} parent=1 // pred_region
      _
    $region17: #{tpu_custom_call.1} parent=1 // pred_fallthru
      _
    // Predicated region
    $region18: #{tpu_custom_call.1} parent=1 // pred_check
      _
    $region19: #{tpu_custom_call.1} parent=1 // pred_check_branch
      %45 = sbr.rel (0) target = $region21
    $region20: #{tpu_custom_call.1} parent=1 // pred_region
      _
    $region21: #{tpu_custom_call.1} parent=1 // pred_fallthru
      _
    // Predicated region
    $region22: #{tpu_custom_call.1} parent=1 // pred_check
      _
    $region23: #{tpu_custom_call.1} parent=1 // pred_check_branch
      %47 = sbr.rel (0) target = $region25
    $region24: #{tpu_custom_call.1} parent=1 // pred_region
      %49 = dma.done [#allocation4], 256
    $region25: #{tpu_custom_call.1} parent=1 // pred_fallthru
      _
    // Predicated region
    $region26: #{tpu_custom_call.1} parent=1 // pred_check
      _
    $region27: #{tpu_custom_call.1} parent=1 // pred_check_branch
      %51 = sbr.rel (0) target = $region29
    $region28: #{tpu_custom_call.1} parent=1 // pred_region
      %53 = dma.done [#allocation7], 1024
    $region29: #{tpu_custom_call.1} parent=1 // pred_fallthru
      _
    %v54 = vld [vmem:[#allocation3] sm:$0xff]
    %v55 = vld [vmem:[#allocation3 + $0x8] sm:$0xff]
    %v56 = vpack.c.bf16 %v55, %v54
    %v57 = vld [vmem:[#allocation6] sm:$0xf]
    %v58 = vld [vmem:[#allocation6 + $0x4] sm:$0xf]
    %v59 = vld [vmem:[#allocation6 + $0x8] sm:$0xf]
    %v60 = vld [vmem:[#allocation6 + $0xc] sm:$0xf]
    %v61 = vld [vmem:[#allocation6 + $0x10] sm:$0xf]
    %v62 = vld [vmem:[#allocation6 + $0x14] sm:$0xf]
    %v63 = vld [vmem:[#allocation6 + $0x18] sm:$0xf]
    %v64 = vld [vmem:[#allocation6 + $0x1c] sm:$0xf]
    %v65 = vld [vmem:[#allocation6 + $0x20] sm:$0xf]
    %v66 = vld [vmem:[#allocation6 + $0x24] sm:$0xf]
    %v67 = vld [vmem:[#allocation6 + $0x28] sm:$0xf]
    %v68 = vld [vmem:[#allocation6 + $0x2c] sm:$0xf]
    %v69 = vld [vmem:[#allocation6 + $0x30] sm:$0xf]
    %v70 = vld [vmem:[#allocation6 + $0x34] sm:$0xf]
    %v71 = vld [vmem:[#allocation6 + $0x38] sm:$0xf]
    %v72 = vld [vmem:[#allocation6 + $0x3c] sm:$0xf]
    %v73 = vld [vmem:[%s2] sm:$0x1]
    %v75 = vperm.slane %v73, 0
    %v93 = vunpack.c.l.b16 %v57
    %v94 = vunpack.c.l.b16 %v58
    %v95 = vunpack.c.l.b16 %v59
    %v96 = vunpack.c.l.b16 %v60
    %v97 = vunpack.c.l.b16 %v61
    %v98 = vunpack.c.l.b16 %v62
    %v99 = vunpack.c.l.b16 %v63
    %v100 = vunpack.c.l.b16 %v64
    %v101 = vunpack.c.l.b16 %v65
    %v102 = vunpack.c.l.b16 %v66
    %v103 = vunpack.c.l.b16 %v67
    %v104 = vunpack.c.l.b16 %v68
    %v105 = vunpack.c.l.b16 %v69
    %v106 = vunpack.c.l.b16 %v70
    %v107 = vunpack.c.l.b16 %v71
    %v108 = vunpack.c.l.b16 %v72
    %v109 = vpack.c.b16 %v94, %v93
    %v110 = vpack.c.b16 %v96, %v95
    %v111 = vpack.c.b16 %v98, %v97
    %v112 = vpack.c.b16 %v100, %v99
    %v113 = vpack.c.b16 %v102, %v101
    %v114 = vpack.c.b16 %v104, %v103
    %v115 = vpack.c.b16 %v106, %v105
    %v116 = vpack.c.b16 %v108, %v107
    %125 = vmatpush.bf16.msra.mxu0 %v116
    %126 = vmatpush.bf16.msra.mxu0 %v115
    %127 = vmatpush.bf16.msra.mxu0 %v114
    %128 = vmatpush.bf16.msra.mxu0 %v113
    %129 = vmatpush.bf16.msra.mxu0 %v112
    %130 = vmatpush.bf16.msra.mxu0 %v111
    %131 = vmatpush.bf16.msra.mxu0 %v110
    %132 = vmatpush.bf16.msra.mxu0 %v109
    %133 = vmatmul.bf16.gmra.mxu0 %v56
    %v134 = vpop.f32.mrf.mxu0
    %v135 = vadd.f32 %v75, %v134
    %v136 = vpop.f32.mrf.mxu0
    %v137 = vadd.f32 %v75, %v136
    %138 = vdwg.mxu0
    %v139 = vmax.f32 %v135, 0.0
    %v140 = vmax.f32 %v137, 0.0
    %v141 = vld [vmem:[%s3] sm:$0x1]
    %v143 = vperm.slane %v141, 0
    %v145 = vmul.f32 %v139, %v143
    %v146 = vmul.f32 %v140, %v143
    %147 = vadd.xlane.f32.xlu0 %v145
    %v148 = vpop.xlane.xlu0 %147
    %149 = vadd.xlane.f32.xlu0 %v146
    %v150 = vpop.xlane.xlu0 %149
    %s151 = sld [smem:[#allocation2]]
    %v152 = vstv %s151
    %v153 = vadd.f32 %v148, %v152
    %v154 = vadd.f32 %v150, %v152
    %v157 = vlaneseq
    %v158 = vand.u32 %v157, 127
    %v159 = vperm.slane %v153, %v158
    %v160 = vadd.s32 %v158, 4294967288
    %v161 = vperm.slane %v154, %v160
    %vm162 = vcmask 130112
    %v163 = vsel %vm162, %v161, %v159
    %vm165 = vcmask 122880
    %166 = vst.msk [vmem:[#allocation8] sm:$0x1] %vm165, %v163
    // Predicated region
    $region30: #{tpu_custom_call.1} parent=1 // pred_check
      _
    $region31: #{tpu_custom_call.1} parent=1 // pred_check_branch
      %168 = sbr.rel (0) target = $region33
    $region32: #{tpu_custom_call.1} parent=1 // pred_region
      %170 = vsyncadd [#allocation5], 0
      %s172 = sshll.u32 [#allocation8], 4
      %s173 = int_to_ptr.vmem [resolvable:$true] %s172
      %s174 = sshll.u32 %s5, 4
      %s175 = int_to_ptr.hbm [resolvable:$true] %s174
      %177 = dma.vmem_to_hbm [thread:$0]  %s173, 16, %s175, [#allocation5]
    $region33: #{tpu_custom_call.1} parent=1 // pred_fallthru
      _
    // Predicated region
    $region34: #{tpu_custom_call.1} parent=1 // pred_check
      _
    $region35: #{tpu_custom_call.1} parent=1 // pred_check_branch
      %179 = sbr.rel (0) target = $region37
    $region36: #{tpu_custom_call.1} parent=1 // pred_region
      %181 = dma.done [#allocation5], 16
    $region37: #{tpu_custom_call.1} parent=1 // pred_fallthru
      _
    %182 = vsyncpa [#allocation4], 1
    %183 = vsyncpa [#allocation7], 1
    %184 = vsyncpa [#allocation5], 1

// kernel: tpu_custom_call.1
$region0: #{tpu_custom_call.1}
  #allocation0 [shape = 'u32[]', space=smem, size = 0x4, offset = 0x4, fixed_abs, tag = 'smem constant byte address 0x4 - core index']
  #allocation1 [shape = 'u32[72,128]{1,0:T(1,128)}', space=vmem, size = 0x9000, scoped, tag = 'internal scratch']
  #allocation2 [shape = 'f32[1]{0:T(128)S(6)}', space=smem, size = 0x200, scoped, tag = 'scoped memory for tpu_custom_call.1']
  %s0 = inlined_call_operand.hbm [shape: f32[16,128], index: 0, kind: input, shape index: {}]
  %s1 = inlined_call_operand.hbm [shape: bf16[128,128], index: 1, kind: input, shape index: {}]
  %s2 = inlined_call_operand.vmem [shape: f32[1,128], index: 2, kind: input, shape index: {}]
  %s3 = inlined_call_operand.vmem [shape: f32[1,128], index: 3, kind: input, shape index: {}]
  %s4 = inlined_call_operand.<no memory space> [shape: f32[1], index: 4, kind: input, shape index: {}]
  %s5 = inlined_call_operand.hbm [shape: f32[1,16], index: 5, kind: output, shape index: {}]
  %s6 = sld [smem:[#allocation0]]
  $region38: #{tpu_custom_call.1} parent=0
    _
  %s8 = ssub.s32 1, %s6
  %s9 = scalar_select 0, %s8, %s6
  %10 = sst [smem:[#allocation2]] %s4
  $region1: #{tpu_custom_call.1} parent=0
    #allocation3 [shape = 'u8[8192]{0}', space=vmem, size = 0x2000, scoped, tag = 'input window, operand 0, single buffered']
    #allocation4 [shape = 's32[1]{0}', space=sflag, size = 0x4, scoped, tag = 'scoped memory for tpu_custom_call.1']
    #allocation5 [shape = 's32[1]{0}', space=sflag, size = 0x4, scoped, tag = 'scoped memory for tpu_custom_call.1']
    #allocation6 [shape = 'u8[32768]{0}', space=vmem, size = 0x8000, scoped, tag = 'input window, operand 1, single buffered']
    #allocation7 [shape = 's32[1]{0}', space=sflag, size = 0x4, scoped, tag = 'scoped memory for tpu_custom_call.1']
    #allocation8 [shape = 'u8[512]{0}', space=vmem, size = 0x400, scoped, tag = 'output window, operand 0, single buffered']
    %11 = vsyncpa [#allocation4], 0
    %12 = vsyncpa [#allocation7], 0
    %13 = vsyncpa [#allocation5], 0
    // Predicated region
    $region2: #{tpu_custom_call.1} parent=1 // pred_check
      _
    $region3: #{tpu_custom_call.1} parent=1 // pred_check_branch
      %15 = sbr.rel (0) target = $region5
    $region4: #{tpu_custom_call.1} parent=1 // pred_region
      %17 = vsyncadd [#allocation4], 0
      %s18 = sshll.u32 %s0, 4
      %s19 = int_to_ptr.hbm [resolvable:$true] %s18
      %s20 = sshll.u32 [#allocation3], 4
      %s21 = int_to_ptr.vmem [resolvable:$true] %s20
      %26 = dma.hbm_to_vmem [thread:$0]  %s19, 256, %s21, [#allocation4], 128, 128, 8
    $region5: #{tpu_custom_call.1} parent=1 // pred_fallthru
      _
    // Predicated region
    $region6: #{tpu_custom_call.1} parent=1 // pred_check
      _
    $region7: #{tpu_custom_call.1} parent=1 // pred_check_branch
      %28 = sbr.rel (0) target = $region9
    $region8: #{tpu_custom_call.1} parent=1 // pred_region
      %30 = vsyncadd [#allocation7], 0
      %s31 = sshll.u32 %s1, 4
      %s32 = int_to_ptr.hbm [resolvable:$true] %s31
      %s33 = sshll.u32 [#allocation6], 4
      %s34 = int_to_ptr.vmem [resolvable:$true] %s33
      %39 = dma.hbm_to_vmem [thread:$0]  %s32, 1024, %s34, [#allocation7], 64, 64, 4
    $region9: #{tpu_custom_call.1} parent=1 // pred_fallthru
      _
    // Predicated region
    $region10: #{tpu_custom_call.1} parent=1 // pred_check
      _
    $region11: #{tpu_custom_call.1} parent=1 // pred_check_branch
      %41 = sbr.rel (0) target = $region13
    $region12: #{tpu_custom_call.1} parent=1 // pred_region
      _
    $region13: #{tpu_custom_call.1} parent=1 // pred_fallthru
      _
    // Predicated region
    $region14: #{tpu_custom_call.1} parent=1 // pred_check
      _
    $region15: #{tpu_custom_call.1} parent=1 // pred_check_branch
      %43 = sbr.rel (0) target = $region17
    $region16: #{tpu_custom_call.1} parent=1 // pred_region
      _
    $region17: #{tpu_custom_call.1} parent=1 // pred_fallthru
      _
    // Predicated region
    $region18: #{tpu_custom_call.1} parent=1 // pred_check
      _
    $region19: #{tpu_custom_call.1} parent=1 // pred_check_branch
      %45 = sbr.rel (0) target = $region21
    $region20: #{tpu_custom_call.1} parent=1 // pred_region
      _
    $region21: #{tpu_custom_call.1} parent=1 // pred_fallthru
      _
    // Predicated region
    $region22: #{tpu_custom_call.1} parent=1 // pred_check
      _
    $region23: #{tpu_custom_call.1} parent=1 // pred_check_branch
      %47 = sbr.rel (0) target = $region25
    $region24: #{tpu_custom_call.1} parent=1 // pred_region
      %49 = dma.done [#allocation4], 256
    $region25: #{tpu_custom_call.1} parent=1 // pred_fallthru
      _
    // Predicated region
    $region26: #{tpu_custom_call.1} parent=1 // pred_check
      _
    $region27: #{tpu_custom_call.1} parent=1 // pred_check_branch
      %51 = sbr.rel (0) target = $region29
    $region28: #{tpu_custom_call.1} parent=1 // pred_region
      %53 = dma.done [#allocation7], 1024
    $region29: #{tpu_custom_call.1} parent=1 // pred_fallthru
      _
    %v54 = vld [vmem:[#allocation3] sm:$0xff]
    %v55 = vld [vmem:[#allocation3 + $0x8] sm:$0xff]
    %v56 = vpack.c.bf16 %v55, %v54
    %v57 = vld [vmem:[#allocation6] sm:$0xf]
    %v58 = vld [vmem:[#allocation6 + $0x4] sm:$0xf]
    %v59 = vld [vmem:[#allocation6 + $0x8] sm:$0xf]
    %v60 = vld [vmem:[#allocation6 + $0xc] sm:$0xf]
    %v61 = vld [vmem:[#allocation6 + $0x10] sm:$0xf]
    %v62 = vld [vmem:[#allocation6 + $0x14] sm:$0xf]
    %v63 = vld [vmem:[#allocation6 + $0x18] sm:$0xf]
    %v64 = vld [vmem:[#allocation6 + $0x1c] sm:$0xf]
    %v65 = vld [vmem:[#allocation6 + $0x20] sm:$0xf]
    %v66 = vld [vmem:[#allocation6 + $0x24] sm:$0xf]
    %v67 = vld [vmem:[#allocation6 + $0x28] sm:$0xf]
    %v68 = vld [vmem:[#allocation6 + $0x2c] sm:$0xf]
    %v69 = vld [vmem:[#allocation6 + $0x30] sm:$0xf]
    %v70 = vld [vmem:[#allocation6 + $0x34] sm:$0xf]
    %v71 = vld [vmem:[#allocation6 + $0x38] sm:$0xf]
    %v72 = vld [vmem:[#allocation6 + $0x3c] sm:$0xf]
    %v73 = vld [vmem:[%s2] sm:$0x1]
    %v75 = vperm.slane %v73, 0
    %v93 = vunpack.c.l.b16 %v57
    %v94 = vunpack.c.l.b16 %v58
    %v95 = vunpack.c.l.b16 %v59
    %v96 = vunpack.c.l.b16 %v60
    %v97 = vunpack.c.l.b16 %v61
    %v98 = vunpack.c.l.b16 %v62
    %v99 = vunpack.c.l.b16 %v63
    %v100 = vunpack.c.l.b16 %v64
    %v101 = vunpack.c.l.b16 %v65
    %v102 = vunpack.c.l.b16 %v66
    %v103 = vunpack.c.l.b16 %v67
    %v104 = vunpack.c.l.b16 %v68
    %v105 = vunpack.c.l.b16 %v69
    %v106 = vunpack.c.l.b16 %v70
    %v107 = vunpack.c.l.b16 %v71
    %v108 = vunpack.c.l.b16 %v72
    %v109 = vpack.c.b16 %v94, %v93
    %v110 = vpack.c.b16 %v96, %v95
    %v111 = vpack.c.b16 %v98, %v97
    %v112 = vpack.c.b16 %v100, %v99
    %v113 = vpack.c.b16 %v102, %v101
    %v114 = vpack.c.b16 %v104, %v103
    %v115 = vpack.c.b16 %v106, %v105
    %v116 = vpack.c.b16 %v108, %v107
    %125 = vmatpush.bf16.msra.mxu0 %v116
    %126 = vmatpush.bf16.msra.mxu0 %v115
    %127 = vmatpush.bf16.msra.mxu0 %v114
    %128 = vmatpush.bf16.msra.mxu0 %v113
    %129 = vmatpush.bf16.msra.mxu0 %v112
    %130 = vmatpush.bf16.msra.mxu0 %v111
    %131 = vmatpush.bf16.msra.mxu0 %v110
    %132 = vmatpush.bf16.msra.mxu0 %v109
    %133 = vmatmul.bf16.gmra.mxu0 %v56
    %v134 = vpop.f32.mrf.mxu0
    %v135 = vadd.f32 %v75, %v134
    %v136 = vpop.f32.mrf.mxu0
    %v137 = vadd.f32 %v75, %v136
    %138 = vdwg.mxu0
    %v139 = vmax.f32 %v135, 0.0
    %v140 = vmax.f32 %v137, 0.0
    %v141 = vld [vmem:[%s3] sm:$0x1]
    %v143 = vperm.slane %v141, 0
    %v145 = vmul.f32 %v139, %v143
    %v146 = vmul.f32 %v140, %v143
    %147 = vadd.xlane.f32.xlu0 %v145
    %v148 = vpop.xlane.xlu0 %147
    %149 = vadd.xlane.f32.xlu0 %v146
    %v150 = vpop.xlane.xlu0 %149
    %s151 = sld [smem:[#allocation2]]
    %v152 = vstv %s151
    %v153 = vadd.f32 %v148, %v152
    %v154 = vadd.f32 %v150, %v152
    %v157 = vlaneseq
    %v158 = vand.u32 %v157, 127
    %v159 = vperm.slane %v153, %v158
    %v160 = vadd.s32 %v158, 4294967288
    %v161 = vperm.slane %v154, %v160
    %vm162 = vcmask 130112
    %v163 = vsel %vm162, %v161, %v159
    %vm165 = vcmask 122880
    %166 = vst.msk [vmem:[#allocation8] sm:$0x1] %vm165, %v163
    // Predicated region
    $region30: #{tpu_custom_call.1} parent=1 // pred_check
      _
    $region31: #{tpu_custom_call.1} parent=1 // pred_check_branch
      %168 = sbr.rel (0) target = $region33
    $region32: #{tpu_custom_call.1} parent=1 // pred_region
      %170 = vsyncadd [#allocation5], 0
      %s172 = sshll.u32 [#allocation8], 4
      %s173 = int_to_ptr.vmem [resolvable:$true] %s172
      %s174 = sshll.u32 %s5, 4
      %s175 = int_to_ptr.hbm [resolvable:$true] %s174
      %177 = dma.vmem_to_hbm [thread:$0]  %s173, 16, %s175, [#allocation5]
    $region33: #{tpu_custom_call.1} parent=1 // pred_fallthru
      _
    // Predicated region
    $region34: #{tpu_custom_call.1} parent=1 // pred_check
      _
    $region35: #{tpu_custom_call.1} parent=1 // pred_check_branch
      %179 = sbr.rel (0) target = $region37
    $region36: #{tpu_custom_call.1} parent=1 // pred_region
      %181 = dma.done [#allocation5], 16
    $region37: #{tpu_custom_call.1} parent=1 // pred_fallthru
      _
    %182 = vsyncpa [#allocation4], 1
    %183 = vsyncpa [#allocation7], 1
    %184 = vsyncpa [#allocation5], 1

</llo_original>
